<compile_context>
chip_gen: v7x
topology: tpu7x:2x2x1
jax: 0.10.0
libtpu: 0.0.40
codegen_flags: <defaults>
</compile_context>

<pallas_src>
import functools

import jax
import jax.numpy as jnp
from jax.experimental import pallas as pl
from jax.experimental.pallas import tpu as pltpu

_LANE = 128


def _cdiv(a, b):
    return (a + b - 1) // b


def _snake_kernel(pred_ref, refd_ref, out_ref, *, n, d, tb):
    """pred_ref: (D, N, TB) f32 coordinate planes (batch on lanes).
    refd_ref: (D, 2N, TB) f32 doubled reference planes, refd[:, m, :] = ref[:, m mod N, :].
    out_ref:  (1, TB) per-example min loss (lane-dense)."""
    # Hoist the predicted coordinate planes: reused by every shift.
    pred_planes = [pred_ref[c] for c in range(d)]                   # each (N, TB)

    best = jnp.full((1, tb), jnp.inf, dtype=jnp.float32)

    # Exact cyclic-shift scan.  Shift s pairs pred[j] with ref[(j - s) mod n], which is the
    # contiguous window refd[(n - s) : (2n - s)].  Static unroll gives the LLO scheduler full
    # visibility; all tensors are (n, TB) with batch on lanes -> lane-dense for any n.
    # TODO(synk): for very large n (>~512) move the shift scan onto an "arbitrary" grid axis
    # with a VMEM accumulator instead of a full static unroll.
    for s in range(n):
        t = n - s
        d2 = None
        for c in range(d):
            diff = pred_planes[c] - refd_ref[c, pl.ds(t, n), :]     # (n, TB)  VPU
            sq = diff * diff
            d2 = sq if d2 is None else d2 + sq
        dist = jnp.sqrt(d2)                                         # (n, TB)  EUP
        tot = jnp.sum(dist, axis=0, keepdims=True)                  # (1, TB)  XLU reduce
        best = jnp.minimum(best, tot)

    out_ref[...] = best * jnp.float32(1.0 / n)


def snake_loss(pred, ref):
    """Pallas implementation of SnakeLoss.forward.

    pred: (B, N, D) predicted snakes
    ref:  (B, N, D) reference snakes (cast to f32 like .float())
    returns: scalar float32
    """
    B, N, D = pred.shape
    assert N > 0
    # TODO(synk): ragged per-example control-point counts (incl. the PyTorch nb_cp == 0 skip)
    # are not expressible with a static Pallas grid; fixed N > 0 per example is assumed.

    # ---- generation-aware tile sizing (batch lives on lanes) -------------------------------
    try:
        vmem_cap = int(pltpu.get_tpu_info().vmem_capacity_bytes)
    except Exception:
        vmem_cap = 64 * 1024 * 1024            # conservative fallback = v7x per-core VMEM

    lanes_blocks = max(1, _cdiv(B, _LANE))     # number of 128-lane batch groups

    bytes_f32 = 4
    # Per 128-lane group per grid step: double-buffered (D,N,128)+(D,2N,128) inputs plus a
    # handful of live (N,128) f32 temporaries.
    per_block = (2 * (D * N * _LANE + D * 2 * N * _LANE) * bytes_f32
                 + 6 * N * _LANE * bytes_f32)
    budget = vmem_cap // 5                     # leave plenty of headroom under the scoped limit
    tb_blocks = max(1, min(lanes_blocks, budget // max(per_block, 1)))
    if lanes_blocks >= 2:
        # v7x has 2 TensorCores: keep at least 2 steps on the "parallel" axis when possible.
        tb_blocks = min(tb_blocks, max(1, lanes_blocks // 2))

    TB = tb_blocks * _LANE
    num_blocks = _cdiv(lanes_blocks, tb_blocks)
    B_pad = num_blocks * TB

    est_bytes = per_block * tb_blocks + 2 * TB * bytes_f32
    vmem_limit = int(min(vmem_cap * 3 // 4, max(3 * est_bytes, 32 * 1024 * 1024)))

    # ---- layout: coordinate planes with batch on the lane axis -----------------------------
    pred_t = jnp.transpose(pred.astype(jnp.float32), (2, 1, 0))     # (D, N, B)
    ref_t = jnp.transpose(ref.astype(jnp.float32), (2, 1, 0))       # (D, N, B)
    refd_t = jnp.concatenate([ref_t, ref_t], axis=1)                # (D, 2N, B): refd[m]=ref[m%N]
    if B_pad != B:
        padcfg = ((0, 0), (0, 0), (0, B_pad - B))
        pred_t = jnp.pad(pred_t, padcfg)
        refd_t = jnp.pad(refd_t, padcfg)

    kernel = functools.partial(_snake_kernel, n=N, d=D, tb=TB)
    losses = pl.pallas_call(
        kernel,
        out_shape=jax.ShapeDtypeStruct((1, B_pad), jnp.float32),
        grid_spec=pltpu.PrefetchScalarGridSpec(
            num_scalar_prefetch=0,
            grid=(num_blocks,),
            in_specs=[
                pl.BlockSpec((D, N, TB), lambda i: (0, 0, i)),       # pred planes
                pl.BlockSpec((D, 2 * N, TB), lambda i: (0, 0, i)),   # doubled ref planes
            ],
            out_specs=pl.BlockSpec((1, TB), lambda i: (0, i)),       # lane-dense per-example loss
        ),
        compiler_params=pltpu.CompilerParams(
            dimension_semantics=("parallel",),   # independent batch blocks -> megacore-friendly
            vmem_limit_bytes=vmem_limit,
        ),
    )(pred_t, refd_t)

    # Final batch mean in the wrapper (padded lanes dropped).
    return jnp.mean(losses[0, :B])


def snake_loss_reference(x, target):
    """Pure-JAX reference mirroring the PyTorch loop semantics."""
    B, N, _ = x.shape
    tot = jnp.float32(0.0)
    for i in range(B):
        ref = target[i].astype(jnp.float32)
        pred = x[i].astype(jnp.float32)
        losses = []
        for s in range(N):
            r = jnp.roll(ref, s, axis=0)
            d = jnp.linalg.norm(pred - r, axis=-1)
            losses.append(jnp.sum(d) / N)
        tot = tot + jnp.min(jnp.stack(losses))
    return tot / B


if __name__ == "__main__":
    key = jax.random.PRNGKey(0)
    kx, kt = jax.random.split(key)
    B, N, D = 2, 8, 2
    x = jax.random.normal(kx, (B, N, D), dtype=jnp.float32)
    target = jax.random.normal(kt, (B, N, D), dtype=jnp.float32)

    loss = snake_loss(x, target)
    jax.block_until_ready(loss)

    ref = snake_loss_reference(x, target)
    assert jnp.allclose(loss, ref, atol=1e-4, rtol=1e-4), (loss, ref)

    print("KERNEL_OK")
</pallas_src>

<mosaic_0001>
module attributes {stable_mosaic.version = 11 : i64} {
  func.func @_snake_kernel(%arg0: i32, %arg1: memref<2x8x128xf32, #tpu.memory_space<vmem>>, %arg2: memref<2x16x128xf32, #tpu.memory_space<vmem>>, %arg3: memref<1x128xf32, #tpu.memory_space<vmem>>) attributes {dimension_semantics = [#tpu.dimension_semantics<parallel>], iteration_bounds = array<i64: 1>, scalar_prefetch = 0 : i64, scratch_operands = 0 : i64, tpu.core_type = #tpu.core_type<tc>, window_params = [{transform_indices = @transform_0, window_bounds = array<i64: 2, 8, 128>}, {transform_indices = @transform_1, window_bounds = array<i64: 2, 16, 128>}, {transform_indices = @transform_2, window_bounds = array<i64: 1, 128>}]} {
    %c0 = arith.constant 0 : index
    %c0_0 = arith.constant 0 : index
    %c0_1 = arith.constant 0 : index
    %0 = vector.load %arg1[%c0, %c0_0, %c0_1] : memref<2x8x128xf32, #tpu.memory_space<vmem>>, vector<1x8x128xf32>
    %1 = vector.shape_cast %0 : vector<1x8x128xf32> to vector<8x128xf32>
    %c1 = arith.constant 1 : index
    %c0_2 = arith.constant 0 : index
    %c0_3 = arith.constant 0 : index
    %2 = vector.load %arg1[%c1, %c0_2, %c0_3] : memref<2x8x128xf32, #tpu.memory_space<vmem>>, vector<1x8x128xf32>
    %3 = vector.shape_cast %2 : vector<1x8x128xf32> to vector<8x128xf32>
    %cst = arith.constant 0x7F800000 : f32
    %4 = vector.broadcast %cst : f32 to vector<1x128xf32>
    %c0_4 = arith.constant 0 : index
    %c8 = arith.constant 8 : index
    %c0_5 = arith.constant 0 : index
    %5 = vector.load %arg2[%c0_4, %c8, %c0_5] : memref<2x16x128xf32, #tpu.memory_space<vmem>>, vector<1x8x128xf32>
    %6 = vector.shape_cast %5 : vector<1x8x128xf32> to vector<8x128xf32>
    %7 = arith.subf %1, %6 : vector<8x128xf32>
    %8 = arith.mulf %7, %7 : vector<8x128xf32>
    %c1_6 = arith.constant 1 : index
    %c8_7 = arith.constant 8 : index
    %c0_8 = arith.constant 0 : index
    %9 = vector.load %arg2[%c1_6, %c8_7, %c0_8] : memref<2x16x128xf32, #tpu.memory_space<vmem>>, vector<1x8x128xf32>
    %10 = vector.shape_cast %9 : vector<1x8x128xf32> to vector<8x128xf32>
    %11 = arith.subf %3, %10 : vector<8x128xf32>
    %12 = arith.mulf %11, %11 : vector<8x128xf32>
    %13 = arith.addf %8, %12 : vector<8x128xf32>
    %14 = math.sqrt %13 : vector<8x128xf32>
    %cst_9 = arith.constant dense<0.000000e+00> : vector<128xf32>
    %15 = vector.multi_reduction <add>, %14, %cst_9 [0] : vector<8x128xf32> to vector<128xf32>
    %16 = vector.shape_cast %15 : vector<128xf32> to vector<1x128xf32>
    %17 = arith.minimumf %4, %16 : vector<1x128xf32>
    %c0_10 = arith.constant 0 : index
    %c7 = arith.constant 7 : index
    %c0_11 = arith.constant 0 : index
    %18 = vector.load %arg2[%c0_10, %c7, %c0_11] : memref<2x16x128xf32, #tpu.memory_space<vmem>>, vector<1x8x128xf32>
    %19 = vector.shape_cast %18 : vector<1x8x128xf32> to vector<8x128xf32>
    %20 = arith.subf %1, %19 : vector<8x128xf32>
    %21 = arith.mulf %20, %20 : vector<8x128xf32>
    %c1_12 = arith.constant 1 : index
    %c7_13 = arith.constant 7 : index
    %c0_14 = arith.constant 0 : index
    %22 = vector.load %arg2[%c1_12, %c7_13, %c0_14] : memref<2x16x128xf32, #tpu.memory_space<vmem>>, vector<1x8x128xf32>
    %23 = vector.shape_cast %22 : vector<1x8x128xf32> to vector<8x128xf32>
    %24 = arith.subf %3, %23 : vector<8x128xf32>
    %25 = arith.mulf %24, %24 : vector<8x128xf32>
    %26 = arith.addf %21, %25 : vector<8x128xf32>
    %27 = math.sqrt %26 : vector<8x128xf32>
    %cst_15 = arith.constant dense<0.000000e+00> : vector<128xf32>
    %28 = vector.multi_reduction <add>, %27, %cst_15 [0] : vector<8x128xf32> to vector<128xf32>
    %29 = vector.shape_cast %28 : vector<128xf32> to vector<1x128xf32>
    %30 = arith.minimumf %17, %29 : vector<1x128xf32>
    %c0_16 = arith.constant 0 : index
    %c6 = arith.constant 6 : index
    %c0_17 = arith.constant 0 : index
    %31 = vector.load %arg2[%c0_16, %c6, %c0_17] : memref<2x16x128xf32, #tpu.memory_space<vmem>>, vector<1x8x128xf32>
    %32 = vector.shape_cast %31 : vector<1x8x128xf32> to vector<8x128xf32>
    %33 = arith.subf %1, %32 : vector<8x128xf32>
    %34 = arith.mulf %33, %33 : vector<8x128xf32>
    %c1_18 = arith.constant 1 : index
    %c6_19 = arith.constant 6 : index
    %c0_20 = arith.constant 0 : index
    %35 = vector.load %arg2[%c1_18, %c6_19, %c0_20] : memref<2x16x128xf32, #tpu.memory_space<vmem>>, vector<1x8x128xf32>
    %36 = vector.shape_cast %35 : vector<1x8x128xf32> to vector<8x128xf32>
    %37 = arith.subf %3, %36 : vector<8x128xf32>
    %38 = arith.mulf %37, %37 : vector<8x128xf32>
    %39 = arith.addf %34, %38 : vector<8x128xf32>
    %40 = math.sqrt %39 : vector<8x128xf32>
    %cst_21 = arith.constant dense<0.000000e+00> : vector<128xf32>
    %41 = vector.multi_reduction <add>, %40, %cst_21 [0] : vector<8x128xf32> to vector<128xf32>
    %42 = vector.shape_cast %41 : vector<128xf32> to vector<1x128xf32>
    %43 = arith.minimumf %30, %42 : vector<1x128xf32>
    %c0_22 = arith.constant 0 : index
    %c5 = arith.constant 5 : index
    %c0_23 = arith.constant 0 : index
    %44 = vector.load %arg2[%c0_22, %c5, %c0_23] : memref<2x16x128xf32, #tpu.memory_space<vmem>>, vector<1x8x128xf32>
    %45 = vector.shape_cast %44 : vector<1x8x128xf32> to vector<8x128xf32>
    %46 = arith.subf %1, %45 : vector<8x128xf32>
    %47 = arith.mulf %46, %46 : vector<8x128xf32>
    %c1_24 = arith.constant 1 : index
    %c5_25 = arith.constant 5 : index
    %c0_26 = arith.constant 0 : index
    %48 = vector.load %arg2[%c1_24, %c5_25, %c0_26] : memref<2x16x128xf32, #tpu.memory_space<vmem>>, vector<1x8x128xf32>
    %49 = vector.shape_cast %48 : vector<1x8x128xf32> to vector<8x128xf32>
    %50 = arith.subf %3, %49 : vector<8x128xf32>
    %51 = arith.mulf %50, %50 : vector<8x128xf32>
    %52 = arith.addf %47, %51 : vector<8x128xf32>
    %53 = math.sqrt %52 : vector<8x128xf32>
    %cst_27 = arith.constant dense<0.000000e+00> : vector<128xf32>
    %54 = vector.multi_reduction <add>, %53, %cst_27 [0] : vector<8x128xf32> to vector<128xf32>
    %55 = vector.shape_cast %54 : vector<128xf32> to vector<1x128xf32>
    %56 = arith.minimumf %43, %55 : vector<1x128xf32>
    %c0_28 = arith.constant 0 : index
    %c4 = arith.constant 4 : index
    %c0_29 = arith.constant 0 : index
    %57 = vector.load %arg2[%c0_28, %c4, %c0_29] : memref<2x16x128xf32, #tpu.memory_space<vmem>>, vector<1x8x128xf32>
    %58 = vector.shape_cast %57 : vector<1x8x128xf32> to vector<8x128xf32>
    %59 = arith.subf %1, %58 : vector<8x128xf32>
    %60 = arith.mulf %59, %59 : vector<8x128xf32>
    %c1_30 = arith.constant 1 : index
    %c4_31 = arith.constant 4 : index
    %c0_32 = arith.constant 0 : index
    %61 = vector.load %arg2[%c1_30, %c4_31, %c0_32] : memref<2x16x128xf32, #tpu.memory_space<vmem>>, vector<1x8x128xf32>
    %62 = vector.shape_cast %61 : vector<1x8x128xf32> to vector<8x128xf32>
    %63 = arith.subf %3, %62 : vector<8x128xf32>
    %64 = arith.mulf %63, %63 : vector<8x128xf32>
    %65 = arith.addf %60, %64 : vector<8x128xf32>
    %66 = math.sqrt %65 : vector<8x128xf32>
    %cst_33 = arith.constant dense<0.000000e+00> : vector<128xf32>
    %67 = vector.multi_reduction <add>, %66, %cst_33 [0] : vector<8x128xf32> to vector<128xf32>
    %68 = vector.shape_cast %67 : vector<128xf32> to vector<1x128xf32>
    %69 = arith.minimumf %56, %68 : vector<1x128xf32>
    %c0_34 = arith.constant 0 : index
    %c3 = arith.constant 3 : index
    %c0_35 = arith.constant 0 : index
    %70 = vector.load %arg2[%c0_34, %c3, %c0_35] : memref<2x16x128xf32, #tpu.memory_space<vmem>>, vector<1x8x128xf32>
    %71 = vector.shape_cast %70 : vector<1x8x128xf32> to vector<8x128xf32>
    %72 = arith.subf %1, %71 : vector<8x128xf32>
    %73 = arith.mulf %72, %72 : vector<8x128xf32>
    %c1_36 = arith.constant 1 : index
    %c3_37 = arith.constant 3 : index
    %c0_38 = arith.constant 0 : index
    %74 = vector.load %arg2[%c1_36, %c3_37, %c0_38] : memref<2x16x128xf32, #tpu.memory_space<vmem>>, vector<1x8x128xf32>
    %75 = vector.shape_cast %74 : vector<1x8x128xf32> to vector<8x128xf32>
    %76 = arith.subf %3, %75 : vector<8x128xf32>
    %77 = arith.mulf %76, %76 : vector<8x128xf32>
    %78 = arith.addf %73, %77 : vector<8x128xf32>
    %79 = math.sqrt %78 : vector<8x128xf32>
    %cst_39 = arith.constant dense<0.000000e+00> : vector<128xf32>
    %80 = vector.multi_reduction <add>, %79, %cst_39 [0] : vector<8x128xf32> to vector<128xf32>
    %81 = vector.shape_cast %80 : vector<128xf32> to vector<1x128xf32>
    %82 = arith.minimumf %69, %81 : vector<1x128xf32>
    %c0_40 = arith.constant 0 : index
    %c2 = arith.constant 2 : index
    %c0_41 = arith.constant 0 : index
    %83 = vector.load %arg2[%c0_40, %c2, %c0_41] : memref<2x16x128xf32, #tpu.memory_space<vmem>>, vector<1x8x128xf32>
    %84 = vector.shape_cast %83 : vector<1x8x128xf32> to vector<8x128xf32>
    %85 = arith.subf %1, %84 : vector<8x128xf32>
    %86 = arith.mulf %85, %85 : vector<8x128xf32>
    %c1_42 = arith.constant 1 : index
    %c2_43 = arith.constant 2 : index
    %c0_44 = arith.constant 0 : index
    %87 = vector.load %arg2[%c1_42, %c2_43, %c0_44] : memref<2x16x128xf32, #tpu.memory_space<vmem>>, vector<1x8x128xf32>
    %88 = vector.shape_cast %87 : vector<1x8x128xf32> to vector<8x128xf32>
    %89 = arith.subf %3, %88 : vector<8x128xf32>
    %90 = arith.mulf %89, %89 : vector<8x128xf32>
    %91 = arith.addf %86, %90 : vector<8x128xf32>
    %92 = math.sqrt %91 : vector<8x128xf32>
    %cst_45 = arith.constant dense<0.000000e+00> : vector<128xf32>
    %93 = vector.multi_reduction <add>, %92, %cst_45 [0] : vector<8x128xf32> to vector<128xf32>
    %94 = vector.shape_cast %93 : vector<128xf32> to vector<1x128xf32>
    %95 = arith.minimumf %82, %94 : vector<1x128xf32>
    %c0_46 = arith.constant 0 : index
    %c1_47 = arith.constant 1 : index
    %c0_48 = arith.constant 0 : index
    %96 = vector.load %arg2[%c0_46, %c1_47, %c0_48] : memref<2x16x128xf32, #tpu.memory_space<vmem>>, vector<1x8x128xf32>
    %97 = vector.shape_cast %96 : vector<1x8x128xf32> to vector<8x128xf32>
    %98 = arith.subf %1, %97 : vector<8x128xf32>
    %99 = arith.mulf %98, %98 : vector<8x128xf32>
    %c1_49 = arith.constant 1 : index
    %c1_50 = arith.constant 1 : index
    %c0_51 = arith.constant 0 : index
    %100 = vector.load %arg2[%c1_49, %c1_50, %c0_51] : memref<2x16x128xf32, #tpu.memory_space<vmem>>, vector<1x8x128xf32>
    %101 = vector.shape_cast %100 : vector<1x8x128xf32> to vector<8x128xf32>
    %102 = arith.subf %3, %101 : vector<8x128xf32>
    %103 = arith.mulf %102, %102 : vector<8x128xf32>
    %104 = arith.addf %99, %103 : vector<8x128xf32>
    %105 = math.sqrt %104 : vector<8x128xf32>
    %cst_52 = arith.constant dense<0.000000e+00> : vector<128xf32>
    %106 = vector.multi_reduction <add>, %105, %cst_52 [0] : vector<8x128xf32> to vector<128xf32>
    %107 = vector.shape_cast %106 : vector<128xf32> to vector<1x128xf32>
    %108 = arith.minimumf %95, %107 : vector<1x128xf32>
    %cst_53 = arith.constant 1.250000e-01 : f32
    %109 = vector.broadcast %cst_53 : f32 to vector<1x128xf32>
    %110 = arith.mulf %108, %109 : vector<1x128xf32>
    %c0_54 = arith.constant 0 : index
    %c0_55 = arith.constant 0 : index
    %111 = vector.load %arg3[%c0_54, %c0_55] : memref<1x128xf32, #tpu.memory_space<vmem>>, vector<1x128xf32>
    tpu.vector_store %arg3[%c0_54, %c0_55], %110 {strides = array<i32>} : memref<1x128xf32, #tpu.memory_space<vmem>>, vector<1x128xf32>,
    return
  }
  func.func @transform_0(%arg0: i32) -> (i32, i32, i32) {
    %c0_i32 = arith.constant 0 : i32
    %c0_i32_0 = arith.constant 0 : i32
    %c0_i32_1 = arith.constant 0 : i32
    return %c0_i32, %c0_i32_0, %arg0 : i32, i32, i32
  }
  func.func @transform_1(%arg0: i32) -> (i32, i32, i32) {
    %c0_i32 = arith.constant 0 : i32
    %c0_i32_0 = arith.constant 0 : i32
    %c0_i32_1 = arith.constant 0 : i32
    return %c0_i32, %c0_i32_0, %arg0 : i32, i32, i32
  }
  func.func @transform_2(%arg0: i32) -> (i32, i32) {
    %c0_i32 = arith.constant 0 : i32
    %c0_i32_0 = arith.constant 0 : i32
    return %c0_i32, %arg0 : i32, i32
  }
}

</mosaic_0001>

<llo_original>
// kernel: tpu_custom_call.1
$region0: #{tpu_custom_call.1}
  #allocation0 [shape = 'u32[]', space=smem, size = 0x4, offset = 0x4, fixed_abs, tag = 'smem constant byte address 0x4 - core index']
  #allocation1 [shape = 'u32[144,128]{1,0:T(1,128)}', space=vmem, size = 0x12000, scoped, tag = 'internal scratch']
  %s0 = inlined_call_operand.hbm [shape: f32[2,8,128], index: 0, kind: input, shape index: {}]
  %s1 = inlined_call_operand.hbm [shape: f32[2,16,128], index: 1, kind: input, shape index: {}]
  %s2 = inlined_call_operand.hbm [shape: f32[1,128], index: 2, kind: output, shape index: {}]
  %s3 = sld [smem:[#allocation0]]
  $region26: #{tpu_custom_call.1} parent=0
    _
  %s5 = ssub.s32 1, %s3
  %s6 = scalar_select 0, %s5, %s3
  $region1: #{tpu_custom_call.1} parent=0
    #allocation2 [shape = 'u8[8192]{0}', space=vmem, size = 0x2000, scoped, tag = 'input window, operand 0, single buffered']
    #allocation3 [shape = 's32[1]{0}', space=sflag, size = 0x4, scoped, tag = 'scoped memory for tpu_custom_call.1']
    #allocation4 [shape = 's32[1]{0}', space=sflag, size = 0x4, scoped, tag = 'scoped memory for tpu_custom_call.1']
    #allocation5 [shape = 'u8[16384]{0}', space=vmem, size = 0x4000, scoped, tag = 'input window, operand 1, single buffered']
    #allocation6 [shape = 's32[1]{0}', space=sflag, size = 0x4, scoped, tag = 'scoped memory for tpu_custom_call.1']
    #allocation7 [shape = 'u8[512]{0}', space=vmem, size = 0x400, scoped, tag = 'output window, operand 0, single buffered']
    %7 = vsyncpa [#allocation3], 0
    %8 = vsyncpa [#allocation6], 0
    %9 = vsyncpa [#allocation4], 0
    // Predicated region
    $region2: #{tpu_custom_call.1} parent=1 // pred_check
      _
    $region3: #{tpu_custom_call.1} parent=1 // pred_check_branch
      %11 = sbr.rel (0) target = $region5
    $region4: #{tpu_custom_call.1} parent=1 // pred_region
      %s13 = ssub.s32 256, 256
      %14 = vsyncadd [#allocation3], %s13
      %s15 = sshll.u32 [#allocation2], 4
      %s16 = int_to_ptr.vmem [resolvable:$true] %s15
      %21 = dma.hbm_to_vmem [thread:$0]  %s0, 256, %s16, [#allocation3], 128, 128, 8
    $region5: #{tpu_custom_call.1} parent=1 // pred_fallthru
      _
    // Predicated region
    $region6: #{tpu_custom_call.1} parent=1 // pred_check
      _
    $region7: #{tpu_custom_call.1} parent=1 // pred_check_branch
      %23 = sbr.rel (0) target = $region9
    $region8: #{tpu_custom_call.1} parent=1 // pred_region
      %s25 = ssub.s32 512, 512
      %26 = vsyncadd [#allocation6], %s25
      %s27 = sshll.u32 [#allocation5], 4
      %s28 = int_to_ptr.vmem [resolvable:$true] %s27
      %33 = dma.hbm_to_vmem [thread:$0]  %s1, 512, %s28, [#allocation6], 128, 128, 8
    $region9: #{tpu_custom_call.1} parent=1 // pred_fallthru
      _
    // Predicated region
    $region10: #{tpu_custom_call.1} parent=1 // pred_check
      _
    $region11: #{tpu_custom_call.1} parent=1 // pred_check_branch
      %35 = sbr.rel (0) target = $region13
    $region12: #{tpu_custom_call.1} parent=1 // pred_region
      %36 = dma.done [#allocation3], 256
    $region13: #{tpu_custom_call.1} parent=1 // pred_fallthru
      _
    // Predicated region
    $region14: #{tpu_custom_call.1} parent=1 // pred_check
      _
    $region15: #{tpu_custom_call.1} parent=1 // pred_check_branch
      %38 = sbr.rel (0) target = $region17
    $region16: #{tpu_custom_call.1} parent=1 // pred_region
      %39 = dma.done [#allocation6], 512
    $region17: #{tpu_custom_call.1} parent=1 // pred_fallthru
      _
    %v40 = vld [vmem:[#allocation2] sm:$0xff]
    %s41 = scalar_lea.vmem [#allocation2], 8
    %v42 = vld [vmem:[%s41] sm:$0xff]
    %v43 = vld [vmem:[#allocation5 + $0x8] sm:$0xff]
    %v44 = vsub.f32 %v40, %v43
    %v45 = vmul.f32 %v44, %v44
    %s46 = scalar_lea.vmem [#allocation5], 16
    %v47 = vld [vmem:[%s46 + $0x8] sm:$0xff]
    %v48 = vsub.f32 %v42, %v47
    %v49 = vmul.f32 %v48, %v48
    %v50 = vadd.f32 %v45, %v49
    %v51 = vrsqrt.pop %v50
    %v52 = vmul.f32 %v50, %v51
    %vm53 = vcmp.eq.f32.partialorder %v50, inf
    %v54 = vsel %vm53, %v50, %v52
    %vm55 = vcmp.eq.f32.partialorder %v50, 0.0
    %v56 = vand.u32 %v50, 2147483648
    %v57 = vsel %vm55, %v56, %v54
    %v58 = vrot.slane %v57, 4
    %v59 = vadd.f32 %v57, %v58
    %v60 = vrot.slane %v59, 2
    %v61 = vadd.f32 %v59, %v60
    %v62 = vrot.slane %v61, 1
    %v63 = vadd.f32 %v61, %v62
    %v64 = vld [vmem:[#allocation5 + $0x7] sm:$0xff]
    %v65 = vsub.f32 %v40, %v64
    %v66 = vmul.f32 %v65, %v65
    %v67 = vld [vmem:[%s46 + $0x7] sm:$0xff]
    %v68 = vsub.f32 %v42, %v67
    %v69 = vmul.f32 %v68, %v68
    %v70 = vadd.f32 %v66, %v69
    %v71 = vrsqrt.pop %v70
    %v72 = vmul.f32 %v70, %v71
    %vm73 = vcmp.eq.f32.partialorder %v70, inf
    %v74 = vsel %vm73, %v70, %v72
    %vm75 = vcmp.eq.f32.partialorder %v70, 0.0
    %v76 = vand.u32 %v70, 2147483648
    %v77 = vsel %vm75, %v76, %v74
    %v78 = vrot.slane %v77, 4
    %v79 = vadd.f32 %v77, %v78
    %v80 = vrot.slane %v79, 2
    %v81 = vadd.f32 %v79, %v80
    %v82 = vrot.slane %v81, 1
    %v83 = vadd.f32 %v81, %v82
    %v84 = vmin.f32 %v63, %v83
    %v85 = vld [vmem:[#allocation5 + $0x6] sm:$0xff]
    %v86 = vsub.f32 %v40, %v85
    %v87 = vmul.f32 %v86, %v86
    %v88 = vld [vmem:[%s46 + $0x6] sm:$0xff]
    %v89 = vsub.f32 %v42, %v88
    %v90 = vmul.f32 %v89, %v89
    %v91 = vadd.f32 %v87, %v90
    %v92 = vrsqrt.pop %v91
    %v93 = vmul.f32 %v91, %v92
    %vm94 = vcmp.eq.f32.partialorder %v91, inf
    %v95 = vsel %vm94, %v91, %v93
    %vm96 = vcmp.eq.f32.partialorder %v91, 0.0
    %v97 = vand.u32 %v91, 2147483648
    %v98 = vsel %vm96, %v97, %v95
    %v99 = vrot.slane %v98, 4
    %v100 = vadd.f32 %v98, %v99
    %v101 = vrot.slane %v100, 2
    %v102 = vadd.f32 %v100, %v101
    %v103 = vrot.slane %v102, 1
    %v104 = vadd.f32 %v102, %v103
    %v105 = vmin.f32 %v84, %v104
    %v106 = vld [vmem:[#allocation5 + $0x5] sm:$0xff]
    %v107 = vsub.f32 %v40, %v106
    %v108 = vmul.f32 %v107, %v107
    %v109 = vld [vmem:[%s46 + $0x5] sm:$0xff]
    %v110 = vsub.f32 %v42, %v109
    %v111 = vmul.f32 %v110, %v110
    %v112 = vadd.f32 %v108, %v111
    %v113 = vrsqrt.pop %v112
    %v114 = vmul.f32 %v112, %v113
    %vm115 = vcmp.eq.f32.partialorder %v112, inf
    %v116 = vsel %vm115, %v112, %v114
    %vm117 = vcmp.eq.f32.partialorder %v112, 0.0
    %v118 = vand.u32 %v112, 2147483648
    %v119 = vsel %vm117, %v118, %v116
    %v120 = vrot.slane %v119, 4
    %v121 = vadd.f32 %v119, %v120
    %v122 = vrot.slane %v121, 2
    %v123 = vadd.f32 %v121, %v122
    %v124 = vrot.slane %v123, 1
    %v125 = vadd.f32 %v123, %v124
    %v126 = vmin.f32 %v105, %v125
    %v127 = vld [vmem:[#allocation5 + $0x4] sm:$0xff]
    %v128 = vsub.f32 %v40, %v127
    %v129 = vmul.f32 %v128, %v128
    %v130 = vld [vmem:[%s46 + $0x4] sm:$0xff]
    %v131 = vsub.f32 %v42, %v130
    %v132 = vmul.f32 %v131, %v131
    %v133 = vadd.f32 %v129, %v132
    %v134 = vrsqrt.pop %v133
    %v135 = vmul.f32 %v133, %v134
    %vm136 = vcmp.eq.f32.partialorder %v133, inf
    %v137 = vsel %vm136, %v133, %v135
    %vm138 = vcmp.eq.f32.partialorder %v133, 0.0
    %v139 = vand.u32 %v133, 2147483648
    %v140 = vsel %vm138, %v139, %v137
    %v141 = vrot.slane %v140, 4
    %v142 = vadd.f32 %v140, %v141
    %v143 = vrot.slane %v142, 2
    %v144 = vadd.f32 %v142, %v143
    %v145 = vrot.slane %v144, 1
    %v146 = vadd.f32 %v144, %v145
    %v147 = vmin.f32 %v126, %v146
    %v148 = vld [vmem:[#allocation5 + $0x3] sm:$0xff]
    %v149 = vsub.f32 %v40, %v148
    %v150 = vmul.f32 %v149, %v149
    %v151 = vld [vmem:[%s46 + $0x3] sm:$0xff]
    %v152 = vsub.f32 %v42, %v151
    %v153 = vmul.f32 %v152, %v152
    %v154 = vadd.f32 %v150, %v153
    %v155 = vrsqrt.pop %v154
    %v156 = vmul.f32 %v154, %v155
    %vm157 = vcmp.eq.f32.partialorder %v154, inf
    %v158 = vsel %vm157, %v154, %v156
    %vm159 = vcmp.eq.f32.partialorder %v154, 0.0
    %v160 = vand.u32 %v154, 2147483648
    %v161 = vsel %vm159, %v160, %v158
    %v162 = vrot.slane %v161, 4
    %v163 = vadd.f32 %v161, %v162
    %v164 = vrot.slane %v163, 2
    %v165 = vadd.f32 %v163, %v164
    %v166 = vrot.slane %v165, 1
    %v167 = vadd.f32 %v165, %v166
    %v168 = vmin.f32 %v147, %v167
    %v169 = vld [vmem:[#allocation5 + $0x2] sm:$0xff]
    %v170 = vsub.f32 %v40, %v169
    %v171 = vmul.f32 %v170, %v170
    %v172 = vld [vmem:[%s46 + $0x2] sm:$0xff]
    %v173 = vsub.f32 %v42, %v172
    %v174 = vmul.f32 %v173, %v173
    %v175 = vadd.f32 %v171, %v174
    %v176 = vrsqrt.pop %v175
    %v177 = vmul.f32 %v175, %v176
    %vm178 = vcmp.eq.f32.partialorder %v175, inf
    %v179 = vsel %vm178, %v175, %v177
    %vm180 = vcmp.eq.f32.partialorder %v175, 0.0
    %v181 = vand.u32 %v175, 2147483648
    %v182 = vsel %vm180, %v181, %v179
    %v183 = vrot.slane %v182, 4
    %v184 = vadd.f32 %v182, %v183
    %v185 = vrot.slane %v184, 2
    %v186 = vadd.f32 %v184, %v185
    %v187 = vrot.slane %v186, 1
    %v188 = vadd.f32 %v186, %v187
    %v189 = vmin.f32 %v168, %v188
    %v190 = vld [vmem:[#allocation5 + $0x1] sm:$0xff]
    %v191 = vsub.f32 %v40, %v190
    %v192 = vmul.f32 %v191, %v191
    %v193 = vld [vmem:[%s46 + $0x1] sm:$0xff]
    %v194 = vsub.f32 %v42, %v193
    %v195 = vmul.f32 %v194, %v194
    %v196 = vadd.f32 %v192, %v195
    %v197 = vrsqrt.pop %v196
    %v198 = vmul.f32 %v196, %v197
    %vm199 = vcmp.eq.f32.partialorder %v196, inf
    %v200 = vsel %vm199, %v196, %v198
    %vm201 = vcmp.eq.f32.partialorder %v196, 0.0
    %v202 = vand.u32 %v196, 2147483648
    %v203 = vsel %vm201, %v202, %v200
    %v204 = vrot.slane %v203, 4
    %v205 = vadd.f32 %v203, %v204
    %v206 = vrot.slane %v205, 2
    %v207 = vadd.f32 %v205, %v206
    %v208 = vrot.slane %v207, 1
    %v209 = vadd.f32 %v207, %v208
    %v210 = vmin.f32 %v189, %v209
    %v211 = vmul.f32 %v210, 0.125
    %212 = vst [vmem:[#allocation7] sm:$0x1] %v211
    // Predicated region
    $region18: #{tpu_custom_call.1} parent=1 // pred_check
      _
    $region19: #{tpu_custom_call.1} parent=1 // pred_check_branch
      %214 = sbr.rel (0) target = $region21
    $region20: #{tpu_custom_call.1} parent=1 // pred_region
      %s216 = ssub.s32 16, 16
      %217 = vsyncadd [#allocation4], %s216
      %s219 = sshll.u32 [#allocation7], 4
      %s220 = int_to_ptr.vmem [resolvable:$true] %s219
      %222 = dma.vmem_to_hbm [thread:$0]  %s220, 16, %s2, [#allocation4]
    $region21: #{tpu_custom_call.1} parent=1 // pred_fallthru
      _
    // Predicated region
    $region22: #{tpu_custom_call.1} parent=1 // pred_check
      _
    $region23: #{tpu_custom_call.1} parent=1 // pred_check_branch
      %224 = sbr.rel (0) target = $region25
    $region24: #{tpu_custom_call.1} parent=1 // pred_region
      %225 = dma.done [#allocation4], 16
    $region25: #{tpu_custom_call.1} parent=1 // pred_fallthru
      _
    %226 = vsyncpa [#allocation3], 1
    %227 = vsyncpa [#allocation6], 1
    %228 = vsyncpa [#allocation4], 1

</llo_original>
